<compile_context>
chip_gen: v7x
topology: tpu7x:2x2x1
jax: 0.10.0
libtpu: 0.0.40
codegen_flags: <defaults>
</compile_context>

<pallas_src>
import functools
import math

import jax
import jax.numpy as jnp
from jax import lax
from jax.experimental import pallas as pl
from jax.experimental.pallas import tpu as pltpu


# Scoped-VMEM budget: above the v5e default (16 MiB), below v7x's 64 MiB
# physical per-TensorCore VMEM.  Actual per-step usage with the largest tiles
# below is ~8 MiB, so this is headroom, not a constraint.
_VMEM_LIMIT_BYTES = 48 * 1024 * 1024

# Linear (GEMM) tile candidates — prefer 512 to cut operand re-streaming and
# grid-step overhead; fall back to the full dimension for small shapes (keeps
# the (8,128) BlockSpec rule satisfied in the tiny self-test).
_TM_CANDIDATES = (512, 256, 128)
_TN_CANDIDATES = (512, 256, 128)
_TK_CANDIDATES = (512, 256, 128)

# Attention tile candidates.  Fast (head-major) path: 256 fills the 256-wide
# MXU on v6e/v7x and halves K/V HBM re-streaming vs 128.  Fallback
# (all-heads-per-block) path keeps 128 so the (tile, C) blocks stay small.
_TQ_FAST = (256, 128)
_TKV_FAST = (256, 128)
_TQ_FUSED = (128,)
_TKV_FUSED = (128,)


def _pick_tile(dim, candidates):
    for c in candidates:
        if c <= dim and dim % c == 0:
            return c
    return dim


# ----------------------------------------------------------------------------
# Tiled linear (matmul + bias) kernel:  out[s] = x @ w[s] + b[s]
# grid = (M//tm, S, N//tn, K//tk); K axis last ("arbitrary"), M leads.
# ----------------------------------------------------------------------------
def _linear_kernel(x_ref, w_ref, b_ref, o_ref, acc_ref):
    # x_ref: (tm, tk), w_ref: (tk, tn), b_ref: (1, tn), o_ref: (tm, tn)
    k = pl.program_id(3)

    @pl.when(k == 0)
    def _init():
        acc_ref[...] = jnp.zeros_like(acc_ref)

    acc_ref[...] += jnp.dot(x_ref[...], w_ref[...],
                            preferred_element_type=jnp.float32)

    @pl.when(k == pl.num_programs(3) - 1)
    def _finalize():
        o_ref[...] = (acc_ref[...] + b_ref[...].astype(jnp.float32)
                      ).astype(o_ref.dtype)


def pallas_linear(x2d, w3, b3):
    """x2d: (M, K), w3: (S, K, N), b3: (S, 1, N) -> (S, M, N) = x2d @ w3 + b3."""
    m_dim, k_dim = x2d.shape
    s_dim, k_dim2, n_dim = w3.shape
    assert k_dim == k_dim2

    tm = _pick_tile(m_dim, _TM_CANDIDATES)
    tn = _pick_tile(n_dim, _TN_CANDIDATES)
    tk = _pick_tile(k_dim, _TK_CANDIDATES)
    # Leading (parallel) axis is M — large, so a v7x 2-TC grid split stays
    # balanced; S (=3 for QKV, =1 for the output projection) sits inside.
    grid = (m_dim // tm, s_dim, n_dim // tn, k_dim // tk)

    itemsize = x2d.dtype.itemsize
    cost = pl.CostEstimate(
        flops=int(2 * s_dim * m_dim * n_dim * k_dim),
        transcendentals=0,
        bytes_accessed=int(itemsize * (
            s_dim * (n_dim // tn) * m_dim * k_dim      # x re-streamed per n tile
            + s_dim * (m_dim // tm) * k_dim * n_dim    # w re-streamed per m tile
            + s_dim * m_dim * n_dim)),                 # output
    )

    return pl.pallas_call(
        _linear_kernel,
        out_shape=jax.ShapeDtypeStruct((s_dim, m_dim, n_dim), x2d.dtype),
        grid_spec=pltpu.PrefetchScalarGridSpec(
            num_scalar_prefetch=0,
            grid=grid,
            in_specs=[
                pl.BlockSpec((tm, tk), lambda m, s, n, k: (m, k)),
                pl.BlockSpec((None, tk, tn), lambda m, s, n, k: (s, k, n)),
                pl.BlockSpec((None, 1, tn), lambda m, s, n, k: (s, 0, n)),
            ],
            out_specs=pl.BlockSpec((None, tm, tn), lambda m, s, n, k: (s, m, n)),
            scratch_shapes=[pltpu.VMEM((tm, tn), jnp.float32)],
        ),
        compiler_params=pltpu.CompilerParams(
            dimension_semantics=("parallel", "parallel", "parallel", "arbitrary"),
            vmem_limit_bytes=_VMEM_LIMIT_BYTES),
        cost_estimate=cost,
    )(x2d, w3, b3)


# ----------------------------------------------------------------------------
# Flash attention — head-major fast path (head_dim % 128 == 0).
# grid = (B*H, T//tq, T//tkv); KV axis last ("arbitrary").
# BlockSpecs slice lane-dense (tile, head_dim) blocks out of (3, B*T, C).
# ----------------------------------------------------------------------------
def _flash_head_kernel(q_ref, k_ref, v_ref, o_ref, m_ref, l_ref, acc_ref):
    # q_ref: (tq, hd), k_ref/v_ref: (tkv, hd), o_ref: (tq, hd)
    # m_ref/l_ref: (tq, 1) f32, acc_ref: (tq, hd) f32
    j = pl.program_id(2)

    @pl.when(j == 0)
    def _init():
        m_ref[...] = jnp.full_like(m_ref, -jnp.inf)
        l_ref[...] = jnp.zeros_like(l_ref)
        acc_ref[...] = jnp.zeros_like(acc_ref)

    q = q_ref[...]          # 1/sqrt(hd) already folded into w_qkv / b_qkv
    k = k_ref[...]
    # q @ k^T contracting last axes -> no explicit transpose.
    s = lax.dot_general(q, k, (((1,), (1,)), ((), ())),
                        preferred_element_type=jnp.float32)      # (tq, tkv)

    m_prev = m_ref[...]
    m_new = jnp.maximum(m_prev, jnp.max(s, axis=-1, keepdims=True))
    alpha = jnp.exp(m_prev - m_new)
    p = jnp.exp(s - m_new)
    l_ref[...] = alpha * l_ref[...] + jnp.sum(p, axis=-1, keepdims=True)
    acc_ref[...] = alpha * acc_ref[...] + jnp.dot(
        p.astype(v_ref.dtype), v_ref[...], preferred_element_type=jnp.float32)
    m_ref[...] = m_new

    @pl.when(j == pl.num_programs(2) - 1)
    def _finalize():
        # Exact divide: runs once per q tile, off the matmul critical path.
        o_ref[...] = (acc_ref[...] / l_ref[...]).astype(o_ref.dtype)


def _attention_fast(qkv3, batch, seq, channels, n_head):
    head_dim = channels // n_head
    tq = _pick_tile(seq, _TQ_FAST)
    tkv = _pick_tile(seq, _TKV_FAST)
    nq = seq // tq
    nkv = seq // tkv
    grid = (batch * n_head, nq, nkv)

    def q_map(bh, i, j):
        return (0, (bh // n_head) * nq + i, bh % n_head)

    def k_map(bh, i, j):
        return (1, (bh // n_head) * nkv + j, bh % n_head)

    def v_map(bh, i, j):
        return (2, (bh // n_head) * nkv + j, bh % n_head)

    def o_map(bh, i, j):
        return ((bh // n_head) * nq + i, bh % n_head)

    itemsize = qkv3.dtype.itemsize
    cost = pl.CostEstimate(
        flops=int(4 * batch * seq * seq * channels),
        transcendentals=int(batch * n_head * seq * seq),
        # q + out read/written once, k/v re-streamed once per q tile.
        bytes_accessed=int(itemsize * batch * seq * channels * (2 + 2 * nq)),
    )

    return pl.pallas_call(
        _flash_head_kernel,
        out_shape=jax.ShapeDtypeStruct((batch * seq, channels), qkv3.dtype),
        grid_spec=pltpu.PrefetchScalarGridSpec(
            num_scalar_prefetch=0,
            grid=grid,
            in_specs=[
                pl.BlockSpec((None, tq, head_dim), q_map),
                pl.BlockSpec((None, tkv, head_dim), k_map),
                pl.BlockSpec((None, tkv, head_dim), v_map),
            ],
            out_specs=pl.BlockSpec((tq, head_dim), o_map),
            scratch_shapes=[
                pltpu.VMEM((tq, 1), jnp.float32),          # running max
                pltpu.VMEM((tq, 1), jnp.float32),          # running sum
                pltpu.VMEM((tq, head_dim), jnp.float32),   # accumulator
            ],
        ),
        compiler_params=pltpu.CompilerParams(
            dimension_semantics=("parallel", "parallel", "arbitrary"),
            vmem_limit_bytes=_VMEM_LIMIT_BYTES),
        cost_estimate=cost,
    )(qkv3, qkv3, qkv3)


# ----------------------------------------------------------------------------
# Flash attention — fused-heads fallback (head_dim % 128 != 0).
# grid = (B * T//tq, T//tkv); KV axis last ("arbitrary").
# Per-head ref slices (views) + per-head direct stores, no concatenate.
# ----------------------------------------------------------------------------
def _flash_fused_heads_kernel(q_ref, k_ref, v_ref, o_ref, m_ref, l_ref,
                              acc_ref, *, n_head, head_dim):
    # q_ref: (tq, C), k_ref/v_ref: (tkv, C), o_ref: (tq, C)
    # m_ref/l_ref: (H, tq, 1) f32, acc_ref: (H, tq, hd) f32
    j = pl.program_id(1)

    @pl.when(j == 0)
    def _init():
        m_ref[...] = jnp.full_like(m_ref, -jnp.inf)
        l_ref[...] = jnp.zeros_like(l_ref)
        acc_ref[...] = jnp.zeros_like(acc_ref)

    for h in range(n_head):
        lo = h * head_dim
        hi = lo + head_dim
        # Static ref slices: load only this head's (tile, hd) slab.
        q = q_ref[:, lo:hi]      # scale already folded into w_qkv / b_qkv
        k = k_ref[:, lo:hi]
        v = v_ref[:, lo:hi]

        s = lax.dot_general(q, k, (((1,), (1,)), ((), ())),
                            preferred_element_type=jnp.float32)  # (tq, tkv)

        m_prev = m_ref[h]
        m_new = jnp.maximum(m_prev, jnp.max(s, axis=-1, keepdims=True))
        alpha = jnp.exp(m_prev - m_new)
        p = jnp.exp(s - m_new)
        l_ref[h] = alpha * l_ref[h] + jnp.sum(p, axis=-1, keepdims=True)
        acc_ref[h] = alpha * acc_ref[h] + jnp.dot(
            p.astype(v.dtype), v, preferred_element_type=jnp.float32)
        m_ref[h] = m_new

    @pl.when(j == pl.num_programs(1) - 1)
    def _finalize():
        for h in range(n_head):
            lo = h * head_dim
            # Per-head direct store — no (tq, C) concatenate temporary.
            o_ref[:, lo:lo + head_dim] = (
                acc_ref[h] / l_ref[h]).astype(o_ref.dtype)


def _attention_fused(qkv3, batch, seq, channels, n_head):
    head_dim = channels // n_head
    tq = _pick_tile(seq, _TQ_FUSED)
    tkv = _pick_tile(seq, _TKV_FUSED)
    nq = seq // tq
    nkv = seq // tkv
    grid = (batch * nq, nkv)            # flattened leading parallel axis

    kernel = functools.partial(_flash_fused_heads_kernel,
                               n_head=n_head, head_dim=head_dim)

    itemsize = qkv3.dtype.itemsize
    cost = pl.CostEstimate(
        flops=int(4 * batch * seq * seq * channels),
        transcendentals=int(batch * n_head * seq * seq),
        bytes_accessed=int(itemsize * batch * seq * channels * (2 + 2 * nq)),
    )

    return pl.pallas_call(
        kernel,
        out_shape=jax.ShapeDtypeStruct((batch * seq, channels), qkv3.dtype),
        grid_spec=pltpu.PrefetchScalarGridSpec(
            num_scalar_prefetch=0,
            grid=grid,
            in_specs=[
                pl.BlockSpec((None, tq, channels), lambda bi, j: (0, bi, 0)),
                pl.BlockSpec((None, tkv, channels),
                             lambda bi, j: (1, (bi // nq) * nkv + j, 0)),
                pl.BlockSpec((None, tkv, channels),
                             lambda bi, j: (2, (bi // nq) * nkv + j, 0)),
            ],
            out_specs=pl.BlockSpec((tq, channels), lambda bi, j: (bi, 0)),
            scratch_shapes=[
                pltpu.VMEM((n_head, tq, 1), jnp.float32),          # running max
                pltpu.VMEM((n_head, tq, 1), jnp.float32),          # running sum
                pltpu.VMEM((n_head, tq, head_dim), jnp.float32),   # accumulator
            ],
        ),
        compiler_params=pltpu.CompilerParams(
            dimension_semantics=("parallel", "arbitrary"),
            vmem_limit_bytes=_VMEM_LIMIT_BYTES),
        cost_estimate=cost,
    )(qkv3, qkv3, qkv3)


def pallas_attention(qkv3, batch, seq, channels, n_head):
    """qkv3: (3, B*T, C) -> non-causal attention output (B*T, C)."""
    head_dim = channels // n_head
    if head_dim % 128 == 0:
        return _attention_fast(qkv3, batch, seq, channels, n_head)
    return _attention_fused(qkv3, batch, seq, channels, n_head)


# ----------------------------------------------------------------------------
# MHSA forward
# ----------------------------------------------------------------------------
def mhsa_forward(x, params, n_head):
    """x: (B, T, C). Matches the PyTorch MHSA forward (eval, split_sections=None)."""
    batch, seq, channels = x.shape
    head_dim = channels // n_head
    x2d = x.reshape(batch * seq, channels)

    # One-time, param-sized weight re-layout + scale folding (in production
    # these would be stored pre-laid-out).
    w_qkv3 = params["w_qkv"].reshape(channels, 3, channels).transpose(1, 0, 2)
    b_qkv3 = params["b_qkv"].reshape(3, 1, channels)
    scale = 1.0 / math.sqrt(head_dim)
    # Fold 1/sqrt(head_dim) into the q projection: kernels never rescale q.
    w_qkv3 = w_qkv3.at[0].multiply(scale)
    b_qkv3 = b_qkv3.at[0].multiply(scale)
    w_proj3 = params["w_proj"].reshape(1, channels, channels)
    b_proj3 = params["b_proj"].reshape(1, 1, channels)

    # QKV projection straight into (3, B*T, C) layout — no split/transpose.
    qkv3 = pallas_linear(x2d, w_qkv3, b_qkv3)                    # (3, B*T, C)

    # Flash attention, output already lane-dense in (B*T, C) layout.
    y2d = pallas_attention(qkv3, batch, seq, channels, n_head)   # (B*T, C)

    # Output projection.
    out = pallas_linear(y2d, w_proj3, b_proj3)                   # (1, B*T, C)
    return out.reshape(batch, seq, channels)


# ----------------------------------------------------------------------------
# Reference (pure JAX) for sanity check
# ----------------------------------------------------------------------------
def mhsa_reference(x, params, n_head):
    batch, seq, channels = x.shape
    hd = channels // n_head
    qkv = x @ params["w_qkv"] + params["b_qkv"]
    q, k, v = jnp.split(qkv, 3, axis=2)
    q = q.reshape(batch, seq, n_head, hd).transpose(0, 2, 1, 3)
    k = k.reshape(batch, seq, n_head, hd).transpose(0, 2, 1, 3)
    v = v.reshape(batch, seq, n_head, hd).transpose(0, 2, 1, 3)
    s = jnp.einsum("bhqd,bhkd->bhqk", q, k) / math.sqrt(hd)
    p = jax.nn.softmax(s, axis=-1)
    y = jnp.einsum("bhqk,bhkd->bhqd", p, v)
    y = y.transpose(0, 2, 1, 3).reshape(batch, seq, channels)
    return y @ params["w_proj"] + params["b_proj"]


# ----------------------------------------------------------------------------
# Main
# ----------------------------------------------------------------------------
def _run_case(key, batch, seq, d_model, n_head):
    kx, kw1, kb1, kw2, kb2 = jax.random.split(key, 5)
    s = 1.0 / math.sqrt(d_model)
    params = {
        "w_qkv": jax.random.uniform(kw1, (d_model, 3 * d_model),
                                    jnp.float32, -s, s),
        "b_qkv": jax.random.uniform(kb1, (3 * d_model,), jnp.float32, -s, s),
        "w_proj": jax.random.uniform(kw2, (d_model, d_model),
                                     jnp.float32, -s, s),
        "b_proj": jax.random.uniform(kb2, (d_model,), jnp.float32, -s, s),
    }
    x = jax.random.normal(kx, (batch, seq, d_model), jnp.float32)

    out = jax.block_until_ready(mhsa_forward(x, params, n_head))
    ref = mhsa_reference(x, params, n_head)
    assert out.shape == (batch, seq, d_model)
    assert jnp.allclose(out, ref, atol=1e-3, rtol=1e-3), (
        f"mismatch vs reference (B={batch}, T={seq}, C={d_model}, H={n_head})")


if __name__ == "__main__":
    key = jax.random.PRNGKey(0)
    k1, k2 = jax.random.split(key)
    # head_dim = 128 -> head-major fast path (heads iterated by the grid).
    _run_case(k1, batch=2, seq=8, d_model=256, n_head=2)
    # head_dim = 8   -> fused-heads fallback path (in-kernel head loop).
    _run_case(k2, batch=2, seq=8, d_model=32, n_head=4)
    print("KERNEL_OK")
</pallas_src>

<mosaic_0001>
module attributes {stable_mosaic.version = 11 : i64} {
  func.func @_linear_kernel(%arg0: i32, %arg1: i32, %arg2: i32, %arg3: i32, %arg4: memref<16x256xf32, #tpu.memory_space<vmem>>, %arg5: memref<1x256x256xf32, #tpu.memory_space<vmem>>, %arg6: memref<1x1x256xf32, #tpu.memory_space<vmem>>, %arg7: memref<1x16x256xf32, #tpu.memory_space<vmem>>, %arg8: memref<16x256xf32, #tpu.memory_space<vmem>>) attributes {dimension_semantics = [#tpu.dimension_semantics<parallel>, #tpu.dimension_semantics<parallel>, #tpu.dimension_semantics<parallel>, #tpu.dimension_semantics<arbitrary>], iteration_bounds = array<i64: 1, 3, 1, 1>, scalar_prefetch = 0 : i64, scratch_operands = 1 : i64, tpu.core_type = #tpu.core_type<tc>, window_params = [{transform_indices = @transform_0, window_bounds = array<i64: 16, 256>}, {transform_indices = @transform_1, window_bounds = array<i64: 1, 256, 256>}, {transform_indices = @transform_2, window_bounds = array<i64: 1, 1, 256>}, {transform_indices = @transform_3, window_bounds = array<i64: 1, 16, 256>}]} {
    %c0_i32 = arith.constant 0 : i32
    %0 = arith.cmpi eq, %arg3, %c0_i32 : i32
    %1 = arith.extui %0 : i1 to i32
    %c0_i32_0 = arith.constant 0 : i32
    %2 = arith.cmpi ne, %1, %c0_i32_0 : i32
    scf.if %2 {
      %cst_11 = arith.constant 0.000000e+00 : f32
      %13 = vector.broadcast %cst_11 : f32 to vector<16x256xf32>
      %c0_12 = arith.constant 0 : index
      %c0_13 = arith.constant 0 : index
      %14 = vector.load %arg8[%c0_12, %c0_13] : memref<16x256xf32, #tpu.memory_space<vmem>>, vector<16x256xf32>
      tpu.vector_store %arg8[%c0_12, %c0_13], %13 {strides = array<i32>} : memref<16x256xf32, #tpu.memory_space<vmem>>, vector<16x256xf32>,
    } else {
    }
    %c0 = arith.constant 0 : index
    %c0_1 = arith.constant 0 : index
    %3 = vector.load %arg8[%c0, %c0_1] : memref<16x256xf32, #tpu.memory_space<vmem>>, vector<16x256xf32>
    %c0_2 = arith.constant 0 : index
    %c0_3 = arith.constant 0 : index
    %4 = vector.load %arg4[%c0_2, %c0_3] : memref<16x256xf32, #tpu.memory_space<vmem>>, vector<16x256xf32>
    %c0_4 = arith.constant 0 : index
    %c0_5 = arith.constant 0 : index
    %c0_6 = arith.constant 0 : index
    %5 = vector.load %arg5[%c0_4, %c0_5, %c0_6] : memref<1x256x256xf32, #tpu.memory_space<vmem>>, vector<1x256x256xf32>
    %6 = vector.shape_cast %5 : vector<1x256x256xf32> to vector<256x256xf32>
    %cst = arith.constant dense<0.000000e+00> : vector<16x256xf32>
    %7 = tpu.matmul %4, %6, %cst {dimension_numbers = #tpu.dot_dimension_numbers<[1], [0], [0], [1], [0, 0, 1, 1], [], []>} : vector<16x256xf32>, vector<256x256xf32>, vector<16x256xf32> -> vector<16x256xf32>
    %8 = arith.addf %3, %7 : vector<16x256xf32>
    %c0_7 = arith.constant 0 : index
    %c0_8 = arith.constant 0 : index
    %9 = vector.load %arg8[%c0_7, %c0_8] : memref<16x256xf32, #tpu.memory_space<vmem>>, vector<16x256xf32>
    tpu.vector_store %arg8[%c0_7, %c0_8], %8 {strides = array<i32>} : memref<16x256xf32, #tpu.memory_space<vmem>>, vector<16x256xf32>,
    %c0_i32_9 = arith.constant 0 : i32
    %10 = arith.cmpi eq, %arg3, %c0_i32_9 : i32
    %11 = arith.extui %10 : i1 to i32
    %c0_i32_10 = arith.constant 0 : i32
    %12 = arith.cmpi ne, %11, %c0_i32_10 : i32
    scf.if %12 {
      %c0_11 = arith.constant 0 : index
      %c0_12 = arith.constant 0 : index
      %13 = vector.load %arg8[%c0_11, %c0_12] : memref<16x256xf32, #tpu.memory_space<vmem>>, vector<16x256xf32>
      %c0_13 = arith.constant 0 : index
      %c0_14 = arith.constant 0 : index
      %c0_15 = arith.constant 0 : index
      %14 = vector.load %arg6[%c0_13, %c0_14, %c0_15] : memref<1x1x256xf32, #tpu.memory_space<vmem>>, vector<1x1x256xf32>
      %15 = vector.shape_cast %14 : vector<1x1x256xf32> to vector<1x256xf32>
      %16 = vector.broadcast %15 : vector<1x256xf32> to vector<16x256xf32>
      %17 = arith.addf %13, %16 : vector<16x256xf32>
      %c0_16 = arith.constant 0 : index
      %c0_17 = arith.constant 0 : index
      %c0_18 = arith.constant 0 : index
      %18 = vector.load %arg7[%c0_16, %c0_17, %c0_18] : memref<1x16x256xf32, #tpu.memory_space<vmem>>, vector<1x16x256xf32>
      %19 = vector.shape_cast %18 : vector<1x16x256xf32> to vector<16x256xf32>
      %20 = vector.shape_cast %17 : vector<16x256xf32> to vector<1x16x256xf32>
      tpu.vector_store %arg7[%c0_16, %c0_17, %c0_18], %20 {strides = array<i32>} : memref<1x16x256xf32, #tpu.memory_space<vmem>>, vector<1x16x256xf32>,
    } else {
    }
    return
  }
  func.func @transform_0(%arg0: i32, %arg1: i32, %arg2: i32, %arg3: i32) -> (i32, i32) {
    %c0_i32 = arith.constant 0 : i32
    return %arg0, %arg3 : i32, i32
  }
  func.func @transform_1(%arg0: i32, %arg1: i32, %arg2: i32, %arg3: i32) -> (i32, i32, i32) {
    %c0_i32 = arith.constant 0 : i32
    return %arg1, %arg3, %arg2 : i32, i32, i32
  }
  func.func @transform_2(%arg0: i32, %arg1: i32, %arg2: i32, %arg3: i32) -> (i32, i32, i32) {
    %c0_i32 = arith.constant 0 : i32
    %c0_i32_0 = arith.constant 0 : i32
    return %arg1, %c0_i32, %arg2 : i32, i32, i32
  }
  func.func @transform_3(%arg0: i32, %arg1: i32, %arg2: i32, %arg3: i32) -> (i32, i32, i32) {
    %c0_i32 = arith.constant 0 : i32
    return %arg1, %arg0, %arg2 : i32, i32, i32
  }
}

</mosaic_0001>

<llo_original>
// kernel: tpu_custom_call.1
$region0: #{tpu_custom_call.1}
  #allocation0 [shape = 'u32[]', space=smem, size = 0x4, offset = 0x4, fixed_abs, tag = 'smem constant byte address 0x4 - core index']
  #allocation1 [shape = 'u32[144,128]{1,0:T(1,128)}', space=vmem, size = 0x12000, scoped, tag = 'internal scratch']
  #allocation2 [shape = 'f32[16,256]{1,0:T(8,128)}', space=vmem, size = 0x4000, scoped, tag = 'scratch operand']
  %s0 = inlined_call_operand.hbm [shape: f32[16,256], index: 0, kind: input, shape index: {}]
  %s1 = inlined_call_operand.hbm [shape: f32[3,256,256], index: 1, kind: input, shape index: {}]
  %s2 = inlined_call_operand.vmem [shape: f32[3,1,256], index: 2, kind: input, shape index: {}]
  %s3 = inlined_call_operand.hbm [shape: f32[3,16,256], index: 3, kind: output, shape index: {}]
  %s4 = sld [smem:[#allocation0]]
  $region61: #{tpu_custom_call.1} parent=0
    _
  %s6 = ssub.s32 1, %s4
  %s7 = scalar_select 0, %s6, %s4
  $region1: #{tpu_custom_call.1} parent=0
    #allocation3 [shape = 'u8[16384]{0}', space=vmem, size = 0x4000, scoped, tag = 'input window, operand 0, single buffered']
    #allocation4 [shape = 's32[2]{0}', space=sflag, size = 0x8, scoped, tag = 'scoped memory for tpu_custom_call.1']
    #allocation5 [shape = 's32[2]{0}', space=sflag, size = 0x8, scoped, tag = 'scoped memory for tpu_custom_call.1']
    #allocation6 [shape = 'u8[524288]{0}', space=vmem, size = 0x80000, scoped, tag = 'input window, operand 1']
    #allocation7 [shape = 's32[2]{0}', space=sflag, size = 0x8, scoped, tag = 'scoped memory for tpu_custom_call.1']
    #allocation8 [shape = 'u8[32768]{0}', space=vmem, size = 0x8000, scoped, tag = 'output window, operand 0']
    %8 = vsyncpa [#allocation4], 0
    %9 = vsyncpa [#allocation7], 0
    %s10 = scalar_lea.sflag [#allocation7], 1
    %11 = vsyncpa %s10, 0
    %12 = vsyncpa [#allocation5], 0
    %s13 = scalar_lea.sflag [#allocation5], 1
    %14 = vsyncpa %s13, 0
    loop: start=0, step=1, limit=5
    $region2: #{tpu_custom_call.1} parent=1 // loop_pre_header
      _
    $region3: #{tpu_custom_call.1} parent=1 // loop_header
      %s16 = sphi 0, %s20
      %p17 = scmp.ge.s32.totalorder %s16, 5
      %s23 = sphi 0, %s49
      %s24 = sphi 0, %s45
      %s25 = sphi 0, %s41
      %s26 = sphi 0, %s37
      %s27 = sphi 0, %s23
      %s28 = sphi 0, %s24
      %s29 = sphi 0, %s25
      %s30 = sphi 0, %s26
      %s31 = sphi 0, %s27
      %s32 = sphi 0, %s28
      %s33 = sphi 0, %s29
      %s34 = sphi 0, %s30
      %s54 = sphi 0, %s56
      %s57 = sphi 0, %s54
      %s58 = sphi 0, %s57
      %s74 = sphi 0, %s58
      %s84 = sphi 0, %s86
      %s87 = sphi 0, %s84
      %s88 = sphi 0, %s87
      %s104 = sphi 0, %s88
      %s112 = sphi 0, %s114
      %s115 = sphi 0, %s112
      %s116 = sphi 0, %s115
      %s132 = sphi 0, %s116
      %s142 = sphi 0, %s144
      %s145 = sphi 0, %s142
      %s146 = sphi 0, %s145
      %s162 = sphi 0, %s146
    $region4: #{tpu_custom_call.1} parent=1 // loop_header_branch
      %19 = sbr.rel (%p17) target = $region8
    $region5: #{tpu_custom_call.1} parent=1 // loop_body
      %s21 = ssub.s32 %s16, 1
      %s22 = ssub.s32 %s16, 2
      %s35 = sadd.s32 1, %s26
      %p36 = scmp.ge.s32.totalorder %s35, 1
      %s37 = scalar_select %p36, 0, %s35
      %s38 = sadd.s32 1, %s25
      %s39 = scalar_select %p36, %s38, %s25
      %p40 = scmp.ge.s32.totalorder %s39, 1
      %s41 = scalar_select %p40, 0, %s39
      %s42 = sadd.s32 1, %s24
      %s43 = scalar_select %p40, %s42, %s24
      %p44 = scmp.ge.s32.totalorder %s43, 3
      %s45 = scalar_select %p44, 0, %s43
      %s46 = sadd.s32 1, %s23
      %s47 = scalar_select %p44, %s46, %s23
      %p48 = scmp.ge.s32.totalorder %s47, 1
      %s49 = scalar_select %p48, 0, %s47
      %s50 = ssub.s32 %s23, %s49
      %s51 = ssub.s32 %s26, %s37
      %s52 = sor.u32 %s50, %s51
      %p53 = scmp.eq.s32.totalorder %s52, 0
      %s55 = sadd.s32 %s54, 1
      %s56 = scalar_select %p53, %s54, %s55
      %p59 = pneg %p53
      %p60 = scmp.eq.s32.totalorder %s16, 2
      %p61 = por %p59, %p60
      %p62 = scmp.ne.s32.totalorder %s54, %s57
      %p63 = scmp.eq.s32.totalorder %s16, 0
      %p64 = por %p62, %p63
      %p65 = scmp.ne.s32.totalorder %s54, %s57
      %p66 = scmp.eq.s32.totalorder %s21, 2
      %p67 = por %p65, %p66
      %p68 = scmp.ne.s32.totalorder %s57, %s58
      %p69 = scmp.eq.s32.totalorder %s21, 0
      %p70 = por %p68, %p69
      %p71 = scmp.ne.s32.totalorder %s57, %s58
      %p72 = scmp.eq.s32.totalorder %s22, 2
      %p73 = por %p71, %p72
      %p75 = scmp.ne.s32.totalorder %s58, %s74
      %p76 = scmp.eq.s32.totalorder %s22, 0
      %p77 = por %p75, %p76
      %s78 = ssub.s32 %s24, %s45
      %s79 = ssub.s32 %s26, %s37
      %s80 = sor.u32 %s78, %s79
      %s81 = ssub.s32 %s25, %s41
      %s82 = sor.u32 %s80, %s81
      %p83 = scmp.eq.s32.totalorder %s82, 0
      %s85 = sadd.s32 %s84, 1
      %s86 = scalar_select %p83, %s84, %s85
      %p89 = pneg %p83
      %p90 = scmp.eq.s32.totalorder %s16, 2
      %p91 = por %p89, %p90
      %p92 = scmp.ne.s32.totalorder %s84, %s87
      %p93 = scmp.eq.s32.totalorder %s16, 0
      %p94 = por %p92, %p93
      %p95 = scmp.ne.s32.totalorder %s84, %s87
      %p96 = scmp.eq.s32.totalorder %s21, 2
      %p97 = por %p95, %p96
      %p98 = scmp.ne.s32.totalorder %s87, %s88
      %p99 = scmp.eq.s32.totalorder %s21, 0
      %p100 = por %p98, %p99
      %p101 = scmp.ne.s32.totalorder %s87, %s88
      %p102 = scmp.eq.s32.totalorder %s22, 2
      %p103 = por %p101, %p102
      %p105 = scmp.ne.s32.totalorder %s88, %s104
      %p106 = scmp.eq.s32.totalorder %s22, 0
      %p107 = por %p105, %p106
      %s108 = ssub.s32 %s24, %s45
      %s109 = ssub.s32 %s25, %s41
      %s110 = sor.u32 %s108, %s109
      %p111 = scmp.eq.s32.totalorder %s110, 0
      %s113 = sadd.s32 %s112, 1
      %s114 = scalar_select %p111, %s112, %s113
      %p117 = pneg %p111
      %p118 = scmp.eq.s32.totalorder %s16, 2
      %p119 = por %p117, %p118
      %p120 = scmp.ne.s32.totalorder %s112, %s115
      %p121 = scmp.eq.s32.totalorder %s16, 0
      %p122 = por %p120, %p121
      %p123 = scmp.ne.s32.totalorder %s112, %s115
      %p124 = scmp.eq.s32.totalorder %s21, 2
      %p125 = por %p123, %p124
      %p126 = scmp.ne.s32.totalorder %s115, %s116
      %p127 = scmp.eq.s32.totalorder %s21, 0
      %p128 = por %p126, %p127
      %p129 = scmp.ne.s32.totalorder %s115, %s116
      %p130 = scmp.eq.s32.totalorder %s22, 2
      %p131 = por %p129, %p130
      %p133 = scmp.ne.s32.totalorder %s116, %s132
      %p134 = scmp.eq.s32.totalorder %s22, 0
      %p135 = por %p133, %p134
      %s136 = ssub.s32 %s24, %s45
      %s137 = ssub.s32 %s23, %s49
      %s138 = sor.u32 %s136, %s137
      %s139 = ssub.s32 %s25, %s41
      %s140 = sor.u32 %s138, %s139
      %p141 = scmp.eq.s32.totalorder %s140, 0
      %s143 = sadd.s32 %s142, 1
      %s144 = scalar_select %p141, %s142, %s143
      %p147 = pneg %p141
      %p148 = scmp.eq.s32.totalorder %s16, 2
      %p149 = por %p147, %p148
      %p150 = scmp.ne.s32.totalorder %s142, %s145
      %p151 = scmp.eq.s32.totalorder %s16, 0
      %p152 = por %p150, %p151
      %p153 = scmp.ne.s32.totalorder %s142, %s145
      %p154 = scmp.eq.s32.totalorder %s21, 2
      %p155 = por %p153, %p154
      %p156 = scmp.ne.s32.totalorder %s145, %s146
      %p157 = scmp.eq.s32.totalorder %s21, 0
      %p158 = por %p156, %p157
      %p159 = scmp.ne.s32.totalorder %s145, %s146
      %p160 = scmp.eq.s32.totalorder %s22, 2
      %p161 = por %p159, %p160
      %p163 = scmp.ne.s32.totalorder %s146, %s162
      %p164 = scmp.eq.s32.totalorder %s22, 0
      %p165 = por %p163, %p164
      %p166 = scmp.le.s32.totalorder 1, %s16
      %p167 = scmp.lt.s32.totalorder %s16, 4
      %p168 = pnand %p166, %p167
      %p169 = pneg %p168
      // Predicated region
      $region9: #{tpu_custom_call.1} parent=5 // pred_check
        _
      $region10: #{tpu_custom_call.1} parent=5 // pred_check_branch
        %171 = sbr.rel (%p168) target = $region12
      $region11: #{tpu_custom_call.1} parent=5 // pred_region
        %s172 = ssub.s32 %s16, 1
        // Predicated region
        $region13: #{tpu_custom_call.1} parent=11 // pred_check
          %p173 = pneg %p70
        $region14: #{tpu_custom_call.1} parent=11 // pred_check_branch
          %175 = sbr.rel (%p173) target = $region16
        $region15: #{tpu_custom_call.1} parent=11 // pred_region
          %s176 = smul.u32 2, %s27
          %s177 = smul.u32 2, %s30
          %s179 = ssub.s32 512, 512
          %180 = vsyncadd [#allocation4], %s179
          %s181 = smul.addr %s176, 2
          %s182 = sadd.s32 %s177, %s181
          %s183 = smul.addr %s182, 128
          %s184 = scalar_lea.hbm %s0, %s183
          %s185 = sshll.u32 [#allocation3], 4
          %s186 = int_to_ptr.vmem [resolvable:$true] %s185
          %191 = dma.hbm_to_vmem [thread:$0]  %s184, 512, %s186, [#allocation4], 256, 256, 16
        $region16: #{tpu_custom_call.1} parent=11 // pred_fallthru
          _
      $region12: #{tpu_custom_call.1} parent=5 // pred_fallthru
        _
      %p192 = scmp.lt.s32.totalorder %s16, 3
      // Predicated region
      $region17: #{tpu_custom_call.1} parent=5 // pred_check
        %p193 = pneg %p192
      $region18: #{tpu_custom_call.1} parent=5 // pred_check_branch
        %195 = sbr.rel (%p193) target = $region20
      $region19: #{tpu_custom_call.1} parent=5 // pred_region
        // Predicated region
        $region21: #{tpu_custom_call.1} parent=19 // pred_check
          %p196 = pneg %p94
        $region22: #{tpu_custom_call.1} parent=19 // pred_check_branch
          %198 = sbr.rel (%p196) target = $region24
        $region23: #{tpu_custom_call.1} parent=19 // pred_region
          %s199 = sand.u32 %s84, 1
          %s200 = scalar_lea.sflag [#allocation7], %s199
          %s201 = sand.u32 %s84, 1
          %s202 = smul.addr %s201, 512
          %s203 = scalar_lea.vmem [#allocation6], %s202
          %s204 = smul.u32 32, %s26
          %s205 = smul.u32 2, %s25
          %s207 = ssub.s32 8192, 8192
          %208 = vsyncadd %s200, %s207
          %s209 = smul.addr %s204, 2
          %s210 = sadd.s32 %s205, %s209
          %s211 = smul.addr %s24, 64
          %s212 = sadd.s32 %s210, %s211
          %s213 = smul.addr %s212, 128
          %s214 = scalar_lea.hbm %s1, %s213
          %s215 = sshll.u32 %s203, 4
          %s216 = int_to_ptr.vmem [resolvable:$true] %s215
          %221 = dma.hbm_to_vmem [thread:$0]  %s214, 8192, %s216, %s200, 256, 256, 16
        $region24: #{tpu_custom_call.1} parent=19 // pred_fallthru
          _
        // Predicated region
        $region25: #{tpu_custom_call.1} parent=19 // pred_check
          %p222 = pneg %p122
        $region26: #{tpu_custom_call.1} parent=19 // pred_check_branch
          %224 = sbr.rel (%p222) target = $region28
        $region27: #{tpu_custom_call.1} parent=19 // pred_region
          %s225 = smul.u32 2, %s25
          %p226 = scmp.lt.s32.totalorder %s24, 2
          %s227 = scalar_select %p226, %s24, 2
          %p228 = scmp.lt.s32.totalorder %s225, 1
          %s229 = scalar_select %p228, %s225, 1
          %s230 = smul.addr %s227, 2
          %s231 = sadd.s32 %s229, %s230
          %s232 = scalar_lea.vmem %s2, %s231
          %s233 = smul.u32 2, %s25
        $region28: #{tpu_custom_call.1} parent=19 // pred_fallthru
          _
      $region20: #{tpu_custom_call.1} parent=5 // pred_fallthru
        _
      %p234 = scmp.le.s32.totalorder 1, %s16
      %p235 = scmp.lt.s32.totalorder %s16, 4
      %p236 = pnand %p234, %p235
      %p237 = pneg %p236
      // Predicated region
      $region29: #{tpu_custom_call.1} parent=5 // pred_check
        _
      $region30: #{tpu_custom_call.1} parent=5 // pred_check_branch
        %239 = sbr.rel (%p236) target = $region32
      $region31: #{tpu_custom_call.1} parent=5 // pred_region
        %s240 = ssub.s32 %s16, 1
        // Predicated region
        $region33: #{tpu_custom_call.1} parent=31 // pred_check
          %p241 = pneg %p70
        $region34: #{tpu_custom_call.1} parent=31 // pred_check_branch
          %243 = sbr.rel (%p241) target = $region36
        $region35: #{tpu_custom_call.1} parent=31 // pred_region
          %244 = dma.done [#allocation4], 512
        $region36: #{tpu_custom_call.1} parent=31 // pred_fallthru
          _
        %s245 = sand.u32 %s87, 1
        %s246 = scalar_lea.sflag [#allocation7], %s245
        %s247 = sand.u32 %s87, 1
        %s248 = smul.addr %s247, 512
        %s249 = scalar_lea.vmem [#allocation6], %s248
        // Predicated region
        $region37: #{tpu_custom_call.1} parent=31 // pred_check
          %p250 = pneg %p100
        $region38: #{tpu_custom_call.1} parent=31 // pred_check_branch
          %252 = sbr.rel (%p250) target = $region40
        $region39: #{tpu_custom_call.1} parent=31 // pred_region
          %253 = dma.done %s246, 8192
        $region40: #{tpu_custom_call.1} parent=31 // pred_fallthru
          _
        %p254 = pneg %p70
        %p255 = pneg %p67
        %s256 = sand.u32 %s87, 1
        %s257 = scalar_lea.sflag [#allocation7], %s256
        %s258 = sand.u32 %s87, 1
        %s259 = smul.addr %s258, 512
        %s260 = scalar_lea.vmem [#allocation6], %s259
        %p261 = pneg %p100
        %p262 = pneg %p97
        %s263 = smul.u32 2, %s29
        %p264 = scmp.lt.s32.totalorder %s28, 2
        %s265 = scalar_select %p264, %s28, 2
        %p266 = scmp.lt.s32.totalorder %s263, 1
        %s267 = scalar_select %p266, %s263, 1
        %s268 = smul.addr %s265, 2
        %s269 = sadd.s32 %s267, %s268
        %s270 = scalar_lea.vmem %s2, %s269
        %p271 = pneg %p128
        %p272 = pneg %p125
        %p273 = pneg %p158
        %p274 = pneg %p155
        %s275 = sand.u32 %s145, 1
        %s276 = scalar_lea.sflag [#allocation5], %s275
        %s277 = sand.u32 %s145, 1
        %s278 = smul.addr %s277, 32
        %s279 = scalar_lea.vmem [#allocation8], %s278
        %s280 = smul.u32 2, %s27
        %s281 = smul.u32 2, %s30
        %s282 = smul.u32 32, %s30
        %s283 = smul.u32 2, %s29
        %s284 = smul.u32 2, %s29
        %p285 = scmp.lt.s32.totalorder %s28, 2
        %s286 = scalar_select %p285, %s28, 2
        %p287 = scmp.lt.s32.totalorder %s284, 1
        %s288 = scalar_select %p287, %s284, 1
        %s289 = smul.addr %s286, 2
        %s290 = sadd.s32 %s288, %s289
        %s291 = scalar_lea.vmem %s2, %s290
        %s292 = smul.u32 2, %s29
        %s293 = smul.u32 2, %s27
        %s294 = smul.u32 2, %s29
        %p295 = scmp.eq.s32.totalorder %s30, 0
        // Predicated region
        $region41: #{tpu_custom_call.1} parent=31 // pred_check
          %p296 = pneg %p295
        $region42: #{tpu_custom_call.1} parent=31 // pred_check_branch
          %298 = sbr.rel (%p296) target = $region44
        $region43: #{tpu_custom_call.1} parent=31 // pred_region
          %299 = vst [vmem:[#allocation2] sm:$0xff] 0.0
          %300 = vst [vmem:[#allocation2 + $0x8] sm:$0xff] 0.0
          %301 = vst [vmem:[#allocation2 + $0x10] sm:$0xff] 0.0
          %302 = vst [vmem:[#allocation2 + $0x18] sm:$0xff] 0.0
        $region44: #{tpu_custom_call.1} parent=31 // pred_fallthru
          _
        %v303 = vld [vmem:[#allocation2] sm:$0xff]
        %v304 = vld [vmem:[#allocation2 + $0x8] sm:$0xff]
        %v305 = vld [vmem:[#allocation2 + $0x10] sm:$0xff]
        %v306 = vld [vmem:[#allocation2 + $0x18] sm:$0xff]
        %v307 = vld [vmem:[#allocation3] sm:$0xff]
        %v308 = vld [vmem:[#allocation3 + $0x8] sm:$0xff]
        %v309 = vld [vmem:[#allocation3 + $0x10] sm:$0xff]
        %v310 = vld [vmem:[#allocation3 + $0x18] sm:$0xff]
        %v311 = vld [vmem:[%s249] sm:$0xff]
        %v312 = vld [vmem:[%s249 + $0x8] sm:$0xff]
        %v313 = vld [vmem:[%s249 + $0x10] sm:$0xff]
        %v314 = vld [vmem:[%s249 + $0x18] sm:$0xff]
        %v315 = vld [vmem:[%s249 + $0x20] sm:$0xff]
        %v316 = vld [vmem:[%s249 + $0x28] sm:$0xff]
        %v317 = vld [vmem:[%s249 + $0x30] sm:$0xff]
        %v318 = vld [vmem:[%s249 + $0x38] sm:$0xff]
        %v319 = vld [vmem:[%s249 + $0x40] sm:$0xff]
        %v320 = vld [vmem:[%s249 + $0x48] sm:$0xff]
        %v321 = vld [vmem:[%s249 + $0x50] sm:$0xff]
        %v322 = vld [vmem:[%s249 + $0x58] sm:$0xff]
        %v323 = vld [vmem:[%s249 + $0x60] sm:$0xff]
        %v324 = vld [vmem:[%s249 + $0x68] sm:$0xff]
        %v325 = vld [vmem:[%s249 + $0x70] sm:$0xff]
        %v326 = vld [vmem:[%s249 + $0x78] sm:$0xff]
        %v327 = vld [vmem:[%s249 + $0x80] sm:$0xff]
        %v328 = vld [vmem:[%s249 + $0x88] sm:$0xff]
        %v329 = vld [vmem:[%s249 + $0x90] sm:$0xff]
        %v330 = vld [vmem:[%s249 + $0x98] sm:$0xff]
        %v331 = vld [vmem:[%s249 + $0xa0] sm:$0xff]
        %v332 = vld [vmem:[%s249 + $0xa8] sm:$0xff]
        %v333 = vld [vmem:[%s249 + $0xb0] sm:$0xff]
        %v334 = vld [vmem:[%s249 + $0xb8] sm:$0xff]
        %v335 = vld [vmem:[%s249 + $0xc0] sm:$0xff]
        %v336 = vld [vmem:[%s249 + $0xc8] sm:$0xff]
        %v337 = vld [vmem:[%s249 + $0xd0] sm:$0xff]
        %v338 = vld [vmem:[%s249 + $0xd8] sm:$0xff]
        %v339 = vld [vmem:[%s249 + $0xe0] sm:$0xff]
        %v340 = vld [vmem:[%s249 + $0xe8] sm:$0xff]
        %v341 = vld [vmem:[%s249 + $0xf0] sm:$0xff]
        %v342 = vld [vmem:[%s249 + $0xf8] sm:$0xff]
        %v343 = vld [vmem:[%s249 + $0x100] sm:$0xff]
        %v344 = vld [vmem:[%s249 + $0x108] sm:$0xff]
        %v345 = vld [vmem:[%s249 + $0x110] sm:$0xff]
        %v346 = vld [vmem:[%s249 + $0x118] sm:$0xff]
        %v347 = vld [vmem:[%s249 + $0x120] sm:$0xff]
        %v348 = vld [vmem:[%s249 + $0x128] sm:$0xff]
        %v349 = vld [vmem:[%s249 + $0x130] sm:$0xff]
        %v350 = vld [vmem:[%s249 + $0x138] sm:$0xff]
        %v351 = vld [vmem:[%s249 + $0x140] sm:$0xff]
        %v352 = vld [vmem:[%s249 + $0x148] sm:$0xff]
        %v353 = vld [vmem:[%s249 + $0x150] sm:$0xff]
        %v354 = vld [vmem:[%s249 + $0x158] sm:$0xff]
        %v355 = vld [vmem:[%s249 + $0x160] sm:$0xff]
        %v356 = vld [vmem:[%s249 + $0x168] sm:$0xff]
        %v357 = vld [vmem:[%s249 + $0x170] sm:$0xff]
        %v358 = vld [vmem:[%s249 + $0x178] sm:$0xff]
        %v359 = vld [vmem:[%s249 + $0x180] sm:$0xff]
        %v360 = vld [vmem:[%s249 + $0x188] sm:$0xff]
        %v361 = vld [vmem:[%s249 + $0x190] sm:$0xff]
        %v362 = vld [vmem:[%s249 + $0x198] sm:$0xff]
        %v363 = vld [vmem:[%s249 + $0x1a0] sm:$0xff]
        %v364 = vld [vmem:[%s249 + $0x1a8] sm:$0xff]
        %v365 = vld [vmem:[%s249 + $0x1b0] sm:$0xff]
        %v366 = vld [vmem:[%s249 + $0x1b8] sm:$0xff]
        %v367 = vld [vmem:[%s249 + $0x1c0] sm:$0xff]
        %v368 = vld [vmem:[%s249 + $0x1c8] sm:$0xff]
        %v369 = vld [vmem:[%s249 + $0x1d0] sm:$0xff]
        %v370 = vld [vmem:[%s249 + $0x1d8] sm:$0xff]
        %v371 = vld [vmem:[%s249 + $0x1e0] sm:$0xff]
        %v372 = vld [vmem:[%s249 + $0x1e8] sm:$0xff]
        %v373 = vld [vmem:[%s249 + $0x1f0] sm:$0xff]
        %v374 = vld [vmem:[%s249 + $0x1f8] sm:$0xff]
        %375 = vmatprep.subr.mxu0 %v312
        %376 = vmatpush1.msra.mxu0 %v311
        %377 = vmatprep.subr.mxu0 %v314
        %378 = vmatpush1.msra.mxu0 %v313
        %379 = vmatprep.subr.mxu0 %v316
        %380 = vmatpush1.msra.mxu0 %v315
        %381 = vmatprep.subr.mxu0 %v318
        %382 = vmatpush1.msra.mxu0 %v317
        %383 = vmatprep.subr.mxu0 %v320
        %384 = vmatpush1.msra.mxu0 %v319
        %385 = vmatprep.subr.mxu0 %v322
        %386 = vmatpush1.msra.mxu0 %v321
        %387 = vmatprep.subr.mxu0 %v324
        %388 = vmatpush1.msra.mxu0 %v323
        %389 = vmatprep.subr.mxu0 %v326
        %390 = vmatpush1.msra.mxu0 %v325
        %391 = vmatprep.subr.mxu0 %v328
        %392 = vmatpush1.msra.mxu0 %v327
        %393 = vmatprep.subr.mxu0 %v330
        %394 = vmatpush1.msra.mxu0 %v329
        %395 = vmatprep.subr.mxu0 %v332
        %396 = vmatpush1.msra.mxu0 %v331
        %397 = vmatprep.subr.mxu0 %v334
        %398 = vmatpush1.msra.mxu0 %v333
        %399 = vmatprep.subr.mxu0 %v336
        %400 = vmatpush1.msra.mxu0 %v335
        %401 = vmatprep.subr.mxu0 %v338
        %402 = vmatpush1.msra.mxu0 %v337
        %403 = vmatprep.subr.mxu0 %v340
        %404 = vmatpush1.msra.mxu0 %v339
        %405 = vmatprep.subr.mxu0 %v342
        %406 = vmatpush1.msra.mxu0 %v341
        %407 = vmatprep.subr.mxu0 %v344
        %408 = vmatpush1.msra.mxu0 %v343
        %409 = vmatprep.subr.mxu0 %v346
        %410 = vmatpush1.msra.mxu0 %v345
        %411 = vmatprep.subr.mxu0 %v348
        %412 = vmatpush1.msra.mxu0 %v347
        %413 = vmatprep.subr.mxu0 %v350
        %414 = vmatpush1.msra.mxu0 %v349
        %415 = vmatprep.subr.mxu0 %v352
        %416 = vmatpush1.msra.mxu0 %v351
        %417 = vmatprep.subr.mxu0 %v354
        %418 = vmatpush1.msra.mxu0 %v353
        %419 = vmatprep.subr.mxu0 %v356
        %420 = vmatpush1.msra.mxu0 %v355
        %421 = vmatprep.subr.mxu0 %v358
        %422 = vmatpush1.msra.mxu0 %v357
        %423 = vmatprep.subr.mxu0 %v360
        %424 = vmatpush1.msra.mxu0 %v359
        %425 = vmatprep.subr.mxu0 %v362
        %426 = vmatpush1.msra.mxu0 %v361
        %427 = vmatprep.subr.mxu0 %v364
        %428 = vmatpush1.msra.mxu0 %v363
        %429 = vmatprep.subr.mxu0 %v366
        %430 = vmatpush1.msra.mxu0 %v365
        %431 = vmatprep.subr.mxu0 %v368
        %432 = vmatpush1.msra.mxu0 %v367
        %433 = vmatprep.subr.mxu0 %v370
        %434 = vmatpush1.msra.mxu0 %v369
        %435 = vmatprep.subr.mxu0 %v372
        %436 = vmatpush1.msra.mxu0 %v371
        %437 = vmatprep.subr.mxu0 %v374
        %438 = vmatpush1.msra.mxu0 %v373
        %439 = vmatprep.mubr.f32.mxu0 %v308
        %440 = vmatmul.mubr.f32.gmra.mrb[0].mxu0 %v307
        %v441 = vpop.f32.mrb[0].mxu0
        %v442 = vadd.f32 0.0, %v441
        %v443 = vpop.f32.mrb[0].mxu0
        %v444 = vadd.f32 0.0, %v443
        %445 = vmatprep.mubr.f32.mxu0 %v310
        %446 = vmatmul.mubr.f32.gmra.mrb[0].mxu0 %v309
        %v447 = vpop.f32.mrb[0].mxu0
        %v448 = vadd.f32 0.0, %v447
        %v449 = vpop.f32.mrb[0].mxu0
        %v450 = vadd.f32 0.0, %v449
        %451 = vdwg.mxu0
        %v452 = vadd.f32 %v303, %v442
        %v453 = vadd.f32 %v304, %v444
        %v454 = vadd.f32 %v305, %v448
        %v455 = vadd.f32 %v306, %v450
        %456 = vst [vmem:[#allocation2] sm:$0xff] %v452
        %457 = vst [vmem:[#allocation2 + $0x8] sm:$0xff] %v453
        %458 = vst [vmem:[#allocation2 + $0x10] sm:$0xff] %v454
        %459 = vst [vmem:[#allocation2 + $0x18] sm:$0xff] %v455
        // Predicated region
        $region45: #{tpu_custom_call.1} parent=31 // pred_check
          %p460 = pneg %p295
        $region46: #{tpu_custom_call.1} parent=31 // pred_check_branch
          %462 = sbr.rel (%p460) target = $region48
        $region47: #{tpu_custom_call.1} parent=31 // pred_region
          %v463 = vld [vmem:[#allocation2] sm:$0xff]
          %v464 = vld [vmem:[#allocation2 + $0x8] sm:$0xff]
          %v465 = vld [vmem:[#allocation2 + $0x10] sm:$0xff]
          %v466 = vld [vmem:[#allocation2 + $0x18] sm:$0xff]
          %v467 = vld [vmem:[%s291] sm:$0x3]
          %v469 = vlaneseq
          %v470 = vshrl.u32 %v469, 7
          %v471 = vsub.s32 0, %v470
          %v472 = vrot.slane %v467, %v471
          %v473 = vlaneseq
          %v474 = vshrl.u32 %v473, 7
          %v475 = vsub.s32 1, %v474
          %v476 = vrot.slane %v467, %v475
          %v479 = vadd.f32 %v463, %v472
          %v480 = vadd.f32 %v464, %v476
          %v481 = vadd.f32 %v465, %v472
          %v482 = vadd.f32 %v466, %v476
          %483 = vst [vmem:[%s279] sm:$0xff] %v479
          %484 = vst [vmem:[%s279 + $0x8] sm:$0xff] %v480
          %485 = vst [vmem:[%s279 + $0x10] sm:$0xff] %v481
          %486 = vst [vmem:[%s279 + $0x18] sm:$0xff] %v482
        $region48: #{tpu_custom_call.1} parent=31 // pred_fallthru
          _
        %s487 = sand.u32 %s145, 1
        %s488 = scalar_lea.sflag [#allocation5], %s487
        %s489 = sand.u32 %s145, 1
        %s490 = smul.addr %s489, 32
        %s491 = scalar_lea.vmem [#allocation8], %s490
        // Predicated region
        $region49: #{tpu_custom_call.1} parent=31 // pred_check
          %p492 = pneg %p155
        $region50: #{tpu_custom_call.1} parent=31 // pred_check_branch
          %494 = sbr.rel (%p492) target = $region52
        $region51: #{tpu_custom_call.1} parent=31 // pred_region
          %s495 = smul.u32 2, %s27
          %s496 = smul.u32 2, %s29
          %s498 = ssub.s32 512, 512
          %499 = vsyncadd %s488, %s498
          %s500 = smul.addr %s495, 2
          %s501 = sadd.s32 %s496, %s500
          %s502 = smul.addr %s28, 4
          %s503 = sadd.s32 %s501, %s502
          %s504 = smul.addr %s503, 128
          %s505 = scalar_lea.hbm %s3, %s504
          %s506 = sshll.u32 %s491, 4
          %s507 = int_to_ptr.vmem [resolvable:$true] %s506
          %512 = dma.vmem_to_hbm [thread:$0]  %s507, 512, %s505, %s488, 256, 256, 16
        $region52: #{tpu_custom_call.1} parent=31 // pred_fallthru
          _
      $region32: #{tpu_custom_call.1} parent=5 // pred_fallthru
        _
      %p513 = scmp.le.s32.totalorder 2, %s16
      // Predicated region
      $region53: #{tpu_custom_call.1} parent=5 // pred_check
        %p514 = pneg %p513
      $region54: #{tpu_custom_call.1} parent=5 // pred_check_branch
        %516 = sbr.rel (%p514) target = $region56
      $region55: #{tpu_custom_call.1} parent=5 // pred_region
        %s517 = ssub.s32 %s16, 2
        // Predicated region
        $region57: #{tpu_custom_call.1} parent=55 // pred_check
          %p518 = pneg %p161
        $region58: #{tpu_custom_call.1} parent=55 // pred_check_branch
          %520 = sbr.rel (%p518) target = $region60
        $region59: #{tpu_custom_call.1} parent=55 // pred_region
          %s521 = sand.u32 %s146, 1
          %s522 = scalar_lea.sflag [#allocation5], %s521
          %s523 = sand.u32 %s146, 1
          %s524 = smul.addr %s523, 32
          %s525 = scalar_lea.vmem [#allocation8], %s524
          %526 = dma.done %s522, 512
        $region60: #{tpu_custom_call.1} parent=55 // pred_fallthru
          _
      $region56: #{tpu_custom_call.1} parent=5 // pred_fallthru
        _
    $region6: #{tpu_custom_call.1} parent=1 // loop_footer
      %s20 = sadd.s32 1, %s16
    $region7: #{tpu_custom_call.1} parent=1 // loop_footer_branch
      %15 = sbr.rel target = $region3
    $region8: #{tpu_custom_call.1} parent=1 // loop_exit
      _
    %527 = vsyncpa [#allocation4], 1
    %s528 = scalar_lea.sflag [#allocation4], 1
    %529 = vsyncpa %s528, 1
    %530 = vsyncpa [#allocation7], 1
    %s531 = scalar_lea.sflag [#allocation7], 1
    %532 = vsyncpa %s531, 1
    %533 = vsyncpa [#allocation5], 1
    %s534 = scalar_lea.sflag [#allocation5], 1
    %535 = vsyncpa %s534, 1

</llo_original>
